<compile_context>
chip_gen: v5e
topology: v5e:2x2
jax: 0.10.0
libtpu: 0.0.40
codegen_flags: <defaults>
</compile_context>

<pallas_src>
import jax
import jax.numpy as jnp
from jax.experimental import pallas as pl
from jax.experimental.pallas import tpu as pltpu

# ---------------- model hyper-parameters (synthetic, deterministic) ----------
VOCAB = 64          # |vocab|
HIDDEN = 32         # embedding / hidden size
NUM_CLASSES = 2     # QA relevance: relevant / not relevant
C_PAD = 128         # lane-dense padded class dim (sliced back in the wrapper)
BATCH = 2
ANS_LEN = 8
Q_LEN = 8

MAX_TILE_B = 8192   # ~12 MiB double-buffered per step -> safe on v5e/v6e/v7x


# ---------------------------- Pallas kernel ---------------------------------
def _qa_head_kernel(cnt_ref, ws_ref, wc_ref, bc_ref, out_ref):
    """Fused pooled-embedding + projection + tanh + classifier.

    cnt_ref: (TB, 2V) bf16   stacked normalized count histograms [ans | q]
    ws_ref:  (2V, 2H) f32    block-diag [emb@W_ans  0; 0  emb@W_q]
    wc_ref:  (2H, C_PAD) f32 classifier weight, zero-padded class dim
    bc_ref:  (1, C_PAD) f32  classifier bias, zero-padded
    out_ref: (TB, C_PAD) f32
    """
    cnt = cnt_ref[...].astype(jnp.float32)                        # bf16 -> f32
    # one K=128 MXU dot: [h_a_pre | h_q_pre]
    pooled = jnp.dot(cnt, ws_ref[...],
                     preferred_element_type=jnp.float32)          # (TB, 2H)
    h = jnp.tanh(pooled)                                          # EUP
    # single classifier dot over the implicitly-concatenated features
    logits = (jnp.dot(h, wc_ref[...], preferred_element_type=jnp.float32)
              + bc_ref[...])                                      # (TB, C_PAD)
    out_ref[...] = logits.astype(out_ref.dtype)


# ------------------------------ wrapper --------------------------------------
def _mean_count_matrix(ids, vocab):
    """(B, L) int ids -> (B, V) f32 with row i = histogram(ids[i]) / L.

    Scatter-add histogram (no (B, L, V) one-hot intermediate)."""
    B, L = ids.shape
    rows = jnp.broadcast_to(jnp.arange(B, dtype=jnp.int32)[:, None], (B, L))
    cnt = jnp.zeros((B, vocab), jnp.float32).at[rows, ids].add(1.0)
    return cnt * (1.0 / L)


def qa_forward_pallas(answer_ids, question_ids, params):
    """forward(answer, question) -> logits (B, NUM_CLASSES) via Pallas."""
    emb = params["embedding"].astype(jnp.float32)                 # (V, H)
    wa = params["w_ans"].astype(jnp.float32)                      # (H, H)
    wq = params["w_q"].astype(jnp.float32)                        # (H, H)
    wc = params["w_cls"].astype(jnp.float32)                      # (2H, C)
    bc = params["b_cls"].astype(jnp.float32)                      # (1, C)

    V, H = VOCAB, HIDDEN

    # Fold embedding into the projections, then stack block-diagonally so the
    # kernel does one (TB,2V)@(2V,2H) dot for both branches at once.
    wa_eff = emb @ wa                                             # (V, H)
    wq_eff = emb @ wq                                             # (V, H)
    ws = jnp.zeros((2 * V, 2 * H), jnp.float32)
    ws = ws.at[:V, :H].set(wa_eff).at[V:, H:].set(wq_eff)         # (2V, 2H)

    # Classifier weight/bias, class dim zero-padded to 128 lanes.
    wc_p = jnp.zeros((2 * H, C_PAD), jnp.float32).at[:, :NUM_CLASSES].set(wc)
    bc_p = jnp.zeros((1, C_PAD), jnp.float32).at[:, :NUM_CLASSES].set(bc)

    # Stacked count histograms; bf16 is exact here (values k/L with L=2^k).
    cnt_a = _mean_count_matrix(answer_ids, V)                     # (B, V)
    cnt_q = _mean_count_matrix(question_ids, V)                   # (B, V)
    cnt = jnp.concatenate([cnt_a, cnt_q], axis=-1).astype(jnp.bfloat16)

    B = answer_ids.shape[0]
    # Largest sublane-aligned batch tile; single grid step whenever it fits.
    tile_b = min(pl.cdiv(B, 8) * 8, MAX_TILE_B)
    b_pad = pl.cdiv(B, tile_b) * tile_b
    if b_pad != B:                                    # zero rows -> bias-only logits
        cnt = jnp.pad(cnt, ((0, b_pad - B), (0, 0)))

    def const_spec(shape):
        # grid-invariant full-array block (weights / bias)
        return pl.BlockSpec(shape, lambda i: (0,) * len(shape))

    out_padded = pl.pallas_call(
        _qa_head_kernel,
        out_shape=jax.ShapeDtypeStruct((b_pad, C_PAD), jnp.float32),
        grid=(b_pad // tile_b,),
        in_specs=[
            pl.BlockSpec((tile_b, 2 * V), lambda i: (i, 0)),      # cnt (bf16)
            const_spec((2 * V, 2 * H)),                           # W_stack
            const_spec((2 * H, C_PAD)),                           # W_cls (padded)
            const_spec((1, C_PAD)),                               # b_cls (padded)
        ],
        out_specs=pl.BlockSpec((tile_b, C_PAD), lambda i: (i, 0)),
        compiler_params=pltpu.CompilerParams(
            dimension_semantics=("parallel",)),
    )(cnt, ws, wc_p, bc_p)

    return out_padded[:B, :NUM_CLASSES]


# --------------------- pure-JAX reference (for validation) -------------------
def qa_forward_ref(answer_ids, question_ids, params):
    emb = params["embedding"]
    a_pool = jnp.mean(jnp.take(emb, answer_ids, axis=0), axis=1)
    q_pool = jnp.mean(jnp.take(emb, question_ids, axis=0), axis=1)
    h_a = jnp.tanh(a_pool @ params["w_ans"])
    h_q = jnp.tanh(q_pool @ params["w_q"])
    feat = jnp.concatenate([h_a, h_q], axis=-1)
    return feat @ params["w_cls"] + params["b_cls"]


def qa_forward(answer_ids, question_ids, params, min_pallas_batch=256):
    """Dispatcher: tiny batches are pure launch/DMA overhead for the kernel."""
    if answer_ids.shape[0] < min_pallas_batch:
        return qa_forward_ref(answer_ids, question_ids, params)
    return qa_forward_pallas(answer_ids, question_ids, params)


# ----------------------- deterministic parameter init -----------------------
def init_params(key):
    k_emb, k_wa, k_wq, k_wc = jax.random.split(key, 4)
    scale = 0.02
    return {
        "embedding": scale * jax.random.normal(k_emb, (VOCAB, HIDDEN),
                                               dtype=jnp.float32),
        "w_ans": scale * jax.random.normal(k_wa, (HIDDEN, HIDDEN),
                                           dtype=jnp.float32),
        "w_q": scale * jax.random.normal(k_wq, (HIDDEN, HIDDEN),
                                         dtype=jnp.float32),
        "w_cls": scale * jax.random.normal(k_wc, (2 * HIDDEN, NUM_CLASSES),
                                           dtype=jnp.float32),
        "b_cls": jnp.zeros((1, NUM_CLASSES), dtype=jnp.float32),
    }


# --------------------------------- main --------------------------------------
if __name__ == "__main__":
    key = jax.random.PRNGKey(0)
    k_params, k_ans, k_q = jax.random.split(key, 3)

    params = init_params(k_params)

    answer = jax.random.randint(k_ans, (BATCH, ANS_LEN), 0, VOCAB,
                                dtype=jnp.int32)
    question = jax.random.randint(k_q, (BATCH, Q_LEN), 0, VOCAB,
                                  dtype=jnp.int32)

    # Run the Pallas kernel path explicitly (the dispatcher would route B=2 to
    # the pure-JAX fallback, which is faster for tiny batches).
    logits = qa_forward_pallas(answer, question, params)
    logits = jax.block_until_ready(logits)

    # sanity: shape, finiteness, and match against the pure-JAX reference
    assert logits.shape == (BATCH, NUM_CLASSES)
    assert bool(jnp.all(jnp.isfinite(logits)))
    ref = qa_forward_ref(answer, question, params)
    assert bool(jnp.allclose(logits, ref, atol=1e-5, rtol=1e-5))

    print("KERNEL_OK")
</pallas_src>

<mosaic_0001>
module attributes {stable_mosaic.version = 11 : i64} {
  func.func @_qa_head_kernel(%arg0: i32, %arg1: memref<8x128xbf16, #tpu.memory_space<vmem>>, %arg2: memref<128x64xf32, #tpu.memory_space<vmem>>, %arg3: memref<64x128xf32, #tpu.memory_space<vmem>>, %arg4: memref<1x128xf32, #tpu.memory_space<vmem>>, %arg5: memref<8x128xf32, #tpu.memory_space<vmem>>) attributes {dimension_semantics = [#tpu.dimension_semantics<parallel>], iteration_bounds = array<i64: 1>, scalar_prefetch = 0 : i64, scratch_operands = 0 : i64, tpu.core_type = #tpu.core_type<tc>, window_params = [{transform_indices = @transform_0, window_bounds = array<i64: 8, 128>}, {pipeline_mode = #tpu.pipeline_mode<synchronous>, transform_indices = @transform_1, window_bounds = array<i64: 128, 64>}, {pipeline_mode = #tpu.pipeline_mode<synchronous>, transform_indices = @transform_2, window_bounds = array<i64: 64, 128>}, {pipeline_mode = #tpu.pipeline_mode<synchronous>, transform_indices = @transform_3, window_bounds = array<i64: 1, 128>}, {transform_indices = @transform_4, window_bounds = array<i64: 8, 128>}]} {
    %c0 = arith.constant 0 : index
    %c0_0 = arith.constant 0 : index
    %0 = vector.load %arg1[%c0, %c0_0] : memref<8x128xbf16, #tpu.memory_space<vmem>>, vector<8x128xbf16>
    %1 = arith.extf %0 : vector<8x128xbf16> to vector<8x128xf32>
    %c0_1 = arith.constant 0 : index
    %c0_2 = arith.constant 0 : index
    %2 = vector.load %arg2[%c0_1, %c0_2] : memref<128x64xf32, #tpu.memory_space<vmem>>, vector<128x64xf32>
    %cst = arith.constant dense<0.000000e+00> : vector<8x64xf32>
    %3 = tpu.matmul %1, %2, %cst {dimension_numbers = #tpu.dot_dimension_numbers<[1], [0], [0], [1], [0, 0, 1, 1], [], []>} : vector<8x128xf32>, vector<128x64xf32>, vector<8x64xf32> -> vector<8x64xf32>
    %4 = math.tanh %3 : vector<8x64xf32>
    %c0_3 = arith.constant 0 : index
    %c0_4 = arith.constant 0 : index
    %5 = vector.load %arg3[%c0_3, %c0_4] : memref<64x128xf32, #tpu.memory_space<vmem>>, vector<64x128xf32>
    %cst_5 = arith.constant dense<0.000000e+00> : vector<8x128xf32>
    %6 = tpu.matmul %4, %5, %cst_5 {dimension_numbers = #tpu.dot_dimension_numbers<[1], [0], [0], [1], [0, 0, 1, 1], [], []>} : vector<8x64xf32>, vector<64x128xf32>, vector<8x128xf32> -> vector<8x128xf32>
    %c0_6 = arith.constant 0 : index
    %c0_7 = arith.constant 0 : index
    %7 = vector.load %arg4[%c0_6, %c0_7] : memref<1x128xf32, #tpu.memory_space<vmem>>, vector<1x128xf32>
    %8 = vector.broadcast %7 : vector<1x128xf32> to vector<8x128xf32>
    %9 = arith.addf %6, %8 : vector<8x128xf32>
    %c0_8 = arith.constant 0 : index
    %c0_9 = arith.constant 0 : index
    %10 = vector.load %arg5[%c0_8, %c0_9] : memref<8x128xf32, #tpu.memory_space<vmem>>, vector<8x128xf32>
    tpu.vector_store %arg5[%c0_8, %c0_9], %9 {strides = array<i32>} : memref<8x128xf32, #tpu.memory_space<vmem>>, vector<8x128xf32>,
    return
  }
  func.func @transform_0(%arg0: i32) -> (i32, i32) {
    %c0_i32 = arith.constant 0 : i32
    %c0_i32_0 = arith.constant 0 : i32
    return %arg0, %c0_i32 : i32, i32
  }
  func.func @transform_1(%arg0: i32) -> (i32, i32) {
    %c0_i32 = arith.constant 0 : i32
    %c0_i32_0 = arith.constant 0 : i32
    %c0_i32_1 = arith.constant 0 : i32
    return %c0_i32, %c0_i32_0 : i32, i32
  }
  func.func @transform_2(%arg0: i32) -> (i32, i32) {
    %c0_i32 = arith.constant 0 : i32
    %c0_i32_0 = arith.constant 0 : i32
    %c0_i32_1 = arith.constant 0 : i32
    return %c0_i32, %c0_i32_0 : i32, i32
  }
  func.func @transform_3(%arg0: i32) -> (i32, i32) {
    %c0_i32 = arith.constant 0 : i32
    %c0_i32_0 = arith.constant 0 : i32
    %c0_i32_1 = arith.constant 0 : i32
    return %c0_i32, %c0_i32_0 : i32, i32
  }
  func.func @transform_4(%arg0: i32) -> (i32, i32) {
    %c0_i32 = arith.constant 0 : i32
    %c0_i32_0 = arith.constant 0 : i32
    return %arg0, %c0_i32 : i32, i32
  }
}

</mosaic_0001>

<llo_original>
// kernel: tpu_custom_call.1
$region0: #{tpu_custom_call.1}
  #allocation0 [shape = 'u32[]', space=smem, size = 0x4, offset = 0x4, fixed_abs, tag = 'smem constant byte address 0x4 - core index']
  #allocation1 [shape = 'u32[72,128]{1,0:T(1,128)}', space=vmem, size = 0x9000, scoped, tag = 'internal scratch']
  %s0 = inlined_call_operand.vmem [shape: bf16[8,128], index: 0, kind: input, shape index: {}]
  %s1 = inlined_call_operand.vmem [shape: f32[128,64], index: 1, kind: input, shape index: {}]
  %s2 = inlined_call_operand.vmem [shape: f32[64,128], index: 2, kind: input, shape index: {}]
  %s3 = inlined_call_operand.vmem [shape: f32[1,128], index: 3, kind: input, shape index: {}]
  %s4 = inlined_call_operand.hbm [shape: f32[8,128], index: 4, kind: output, shape index: {}]
  %s5 = sld [smem:[#allocation0]]
  $region26: #{tpu_custom_call.1} parent=0
    _
  %s7 = ssub.s32 1, %s5
  %s8 = scalar_select 0, %s7, %s5
  $region1: #{tpu_custom_call.1} parent=0
    #allocation2 [shape = 'u8[4096]{0}', space=vmem, size = 0x1000, scoped, tag = 'output window, operand 0, single buffered']
    #allocation3 [shape = 's32[1]{0}', space=sflag, size = 0x4, scoped, tag = 'scoped memory for tpu_custom_call.1']
    %9 = vsyncpa [#allocation3], 0
    // Predicated region
    $region2: #{tpu_custom_call.1} parent=1 // pred_check
      _
    $region3: #{tpu_custom_call.1} parent=1 // pred_check_branch
      %11 = sbr.rel (0) target = $region5
    $region4: #{tpu_custom_call.1} parent=1 // pred_region
      _
    $region5: #{tpu_custom_call.1} parent=1 // pred_fallthru
      _
    // Predicated region
    $region6: #{tpu_custom_call.1} parent=1 // pred_check
      _
    $region7: #{tpu_custom_call.1} parent=1 // pred_check_branch
      %13 = sbr.rel (0) target = $region9
    $region8: #{tpu_custom_call.1} parent=1 // pred_region
      _
    $region9: #{tpu_custom_call.1} parent=1 // pred_fallthru
      _
    // Predicated region
    $region10: #{tpu_custom_call.1} parent=1 // pred_check
      _
    $region11: #{tpu_custom_call.1} parent=1 // pred_check_branch
      %15 = sbr.rel (0) target = $region13
    $region12: #{tpu_custom_call.1} parent=1 // pred_region
      _
    $region13: #{tpu_custom_call.1} parent=1 // pred_fallthru
      _
    // Predicated region
    $region14: #{tpu_custom_call.1} parent=1 // pred_check
      _
    $region15: #{tpu_custom_call.1} parent=1 // pred_check_branch
      %17 = sbr.rel (0) target = $region17
    $region16: #{tpu_custom_call.1} parent=1 // pred_region
      _
    $region17: #{tpu_custom_call.1} parent=1 // pred_fallthru
      _
    %v18 = vld [vmem:[%s0] sm:$0xf]
    %v19 = vunpack.c.l.bf16 %v18
    %v20 = vld [vmem:[%s1] sm:$0xff]
    %v21 = vld [vmem:[%s1 + $0x8] sm:$0xff]
    %v22 = vld [vmem:[%s1 + $0x10] sm:$0xff]
    %v23 = vld [vmem:[%s1 + $0x18] sm:$0xff]
    %v24 = vld [vmem:[%s1 + $0x20] sm:$0xff]
    %v25 = vld [vmem:[%s1 + $0x28] sm:$0xff]
    %v26 = vld [vmem:[%s1 + $0x30] sm:$0xff]
    %v27 = vld [vmem:[%s1 + $0x38] sm:$0xff]
    %v28 = vld [vmem:[%s1 + $0x40] sm:$0xff]
    %v29 = vld [vmem:[%s1 + $0x48] sm:$0xff]
    %v30 = vld [vmem:[%s1 + $0x50] sm:$0xff]
    %v31 = vld [vmem:[%s1 + $0x58] sm:$0xff]
    %v32 = vld [vmem:[%s1 + $0x60] sm:$0xff]
    %v33 = vld [vmem:[%s1 + $0x68] sm:$0xff]
    %v34 = vld [vmem:[%s1 + $0x70] sm:$0xff]
    %v35 = vld [vmem:[%s1 + $0x78] sm:$0xff]
    %36 = vmatpush.msra.mxu0 %v35
    %37 = vmatpush.msra.mxu0 %v34
    %38 = vmatpush.msra.mxu0 %v33
    %39 = vmatpush.msra.mxu0 %v32
    %40 = vmatpush.msra.mxu0 %v31
    %41 = vmatpush.msra.mxu0 %v30
    %42 = vmatpush.msra.mxu0 %v29
    %43 = vmatpush.msra.mxu0 %v28
    %44 = vmatpush.msra.mxu0 %v27
    %45 = vmatpush.msra.mxu0 %v26
    %46 = vmatpush.msra.mxu0 %v25
    %47 = vmatpush.msra.mxu0 %v24
    %48 = vmatpush.msra.mxu0 %v23
    %49 = vmatpush.msra.mxu0 %v22
    %50 = vmatpush.msra.mxu0 %v21
    %51 = vmatpush.msra.mxu0 %v20
    %52 = vmatmul.f32.gmra.mxu0 %v19
    %v53 = vpop.f32.mrf.mxu0
    %v54 = vadd.f32 0.0, %v53
    %55 = vdwg.mxu0
    %v56 = vtanh.pop %v54
    %v57 = vld [vmem:[%s2] sm:$0xff]
    %v58 = vld [vmem:[%s2 + $0x8] sm:$0xff]
    %v59 = vld [vmem:[%s2 + $0x10] sm:$0xff]
    %v60 = vld [vmem:[%s2 + $0x18] sm:$0xff]
    %v61 = vld [vmem:[%s2 + $0x20] sm:$0xff]
    %v62 = vld [vmem:[%s2 + $0x28] sm:$0xff]
    %v63 = vld [vmem:[%s2 + $0x30] sm:$0xff]
    %v64 = vld [vmem:[%s2 + $0x38] sm:$0xff]
    %v65 = vld [vmem:[%s3] sm:$0x1]
    %v67 = vperm.slane %v65, 0
    %vm69 = vcmask 523264
    %v71 = vsel %vm69, %v56, 0
    %73 = vmatpush.msra.mxu0 0.0
    %74 = vmatpush.msra.mxu0 0.0
    %75 = vmatpush.msra.mxu0 0.0
    %76 = vmatpush.msra.mxu0 0.0
    %77 = vmatpush.msra.mxu0 0.0
    %78 = vmatpush.msra.mxu0 0.0
    %79 = vmatpush.msra.mxu0 0.0
    %80 = vmatpush.msra.mxu0 0.0
    %81 = vmatpush.msra.mxu0 %v64
    %82 = vmatpush.msra.mxu0 %v63
    %83 = vmatpush.msra.mxu0 %v62
    %84 = vmatpush.msra.mxu0 %v61
    %85 = vmatpush.msra.mxu0 %v60
    %86 = vmatpush.msra.mxu0 %v59
    %87 = vmatpush.msra.mxu0 %v58
    %88 = vmatpush.msra.mxu0 %v57
    %89 = vmatmul.f32.gmra.mxu0 %v71
    %v90 = vpop.f32.mrf.mxu0
    %v91 = vadd.f32 %v67, %v90
    %92 = vdwg.mxu0
    %93 = vst [vmem:[#allocation2] sm:$0xff] %v91
    // Predicated region
    $region18: #{tpu_custom_call.1} parent=1 // pred_check
      _
    $region19: #{tpu_custom_call.1} parent=1 // pred_check_branch
      %95 = sbr.rel (0) target = $region21
    $region20: #{tpu_custom_call.1} parent=1 // pred_region
      %97 = vsyncadd [#allocation3], 0
      %s99 = sshll.u32 [#allocation2], 4
      %s100 = int_to_ptr.vmem [resolvable:$true] %s99
      %s101 = sshll.u32 %s4, 4
      %s102 = int_to_ptr.hbm [resolvable:$true] %s101
      %104 = dma.vmem_to_hbm [thread:$0]  %s100, 128, %s102, [#allocation3]
    $region21: #{tpu_custom_call.1} parent=1 // pred_fallthru
      _
    // Predicated region
    $region22: #{tpu_custom_call.1} parent=1 // pred_check
      _
    $region23: #{tpu_custom_call.1} parent=1 // pred_check_branch
      %106 = sbr.rel (0) target = $region25
    $region24: #{tpu_custom_call.1} parent=1 // pred_region
      %108 = dma.done [#allocation3], 128
    $region25: #{tpu_custom_call.1} parent=1 // pred_fallthru
      _
    %109 = vsyncpa [#allocation3], 1

</llo_original>
